<compile_context>
chip_gen: v6e
topology: v6e:2x2x1
jax: 0.10.0
libtpu: 0.0.40
codegen_flags: <defaults>
</compile_context>

<pallas_src>
import jax
import jax.numpy as jnp
from jax.experimental import pallas as pl
from jax.experimental.pallas import tpu as pltpu

HIDDEN_SIZE = 128   # matches `hidden_size = 128` in the PyTorch source
INPUT_SIZE = 32
OUTPUT_SIZE = 16
LAYER_NUM = 4       # 3x (Linear + ReLU) followed by a final Linear

DEFAULT_BLOCK_B = 2048   # batch rows per grid step (cap); small batches use one step


def _mlp_kernel(x_ref,
                w1_ref, b1_ref,
                w2_ref, b2_ref,
                w3_ref, b3_ref,
                w4_ref, b4_ref,
                o_ref):
    """One batch tile of the MLP: bf16 matmuls on the MXU, f32 accum + f32 elementwise."""
    x = x_ref[...].astype(jnp.bfloat16)

    # Layer 1: Linear + ReLU
    h = jnp.dot(x, w1_ref[...], preferred_element_type=jnp.float32) + b1_ref[...]
    h = jnp.maximum(h, 0.0)

    # Layer 2: Linear + ReLU
    h = jnp.dot(h.astype(jnp.bfloat16), w2_ref[...],
                preferred_element_type=jnp.float32) + b2_ref[...]
    h = jnp.maximum(h, 0.0)

    # Layer 3: Linear + ReLU
    h = jnp.dot(h.astype(jnp.bfloat16), w3_ref[...],
                preferred_element_type=jnp.float32) + b3_ref[...]
    h = jnp.maximum(h, 0.0)

    # Layer 4: final Linear (no activation); logical 16-wide output, stored directly.
    out = jnp.dot(h.astype(jnp.bfloat16), w4_ref[...],
                  preferred_element_type=jnp.float32) + b4_ref[...]
    o_ref[...] = out.astype(o_ref.dtype)


def pack_params(params):
    """One-time packing of f32 params into the kernel's preferred layout.

    Weights -> bf16 (MXU operands), biases stay f32 (f32 accumulate + f32 VPU path,
    correct on v5e which lacks a bf16 VPU). Do this once, outside the hot path."""
    packed = []
    for (w, b) in params:
        packed.append((w.astype(jnp.bfloat16), b.astype(jnp.float32)))
    return tuple(packed)


def _batch_dim_semantics(grid_size):
    """Pick grid-axis semantics: CORE_PARALLEL on v7x (2 TensorCores/chip) so the
    batch tiles are actually sharded across cores; plain "parallel" elsewhere."""
    try:
        kind = jax.devices()[0].device_kind.lower()
        if (grid_size >= 2 and grid_size % 2 == 0
                and hasattr(pltpu, "CORE_PARALLEL") and "v7" in kind):
            return (pltpu.CORE_PARALLEL,)
    except Exception:
        pass
    return ("parallel",)


def net_forward(x, packed_params, block_b=DEFAULT_BLOCK_B):
    """packed_params: tuple of (W_t bf16 [in, out], b f32 [1, out]) from pack_params()."""
    (w1, b1), (w2, b2), (w3, b3), (w4, b4) = packed_params
    batch, in_dim = x.shape
    out_dim = w4.shape[1]

    # Batch tile: single grid step for small batches, capped at block_b for large ones.
    # Must be a multiple of 8 sublanes; no jnp.pad of x — the trailing partial tile is
    # handled by Pallas block padding (rows are independent; OOB output rows are masked).
    bb = ((min(batch, block_b) + 7) // 8) * 8
    grid_b = pl.cdiv(batch, bb)

    # Weights/biases: constant block index across the batch grid -> VMEM-resident,
    # their HBM->VMEM DMA is issued once, not per batch tile.
    resident = lambda shape: pl.BlockSpec(shape, lambda i: (0, 0))

    out = pl.pallas_call(
        _mlp_kernel,
        out_shape=jax.ShapeDtypeStruct((batch, out_dim), jnp.float32),
        grid=(grid_b,),
        in_specs=[
            pl.BlockSpec((bb, in_dim), lambda i: (i, 0)),   # x: streamed per batch tile
            resident(w1.shape), resident(b1.shape),
            resident(w2.shape), resident(b2.shape),
            resident(w3.shape), resident(b3.shape),
            resident(w4.shape), resident(b4.shape),
        ],
        out_specs=pl.BlockSpec((bb, out_dim), lambda i: (i, 0)),
        compiler_params=pltpu.CompilerParams(
            dimension_semantics=_batch_dim_semantics(grid_b),
        ),
    )(x, w1, b1, w2, b2, w3, b3, w4, b4)

    return out


def init_params(key, input_size, hidden_size, output_size, layer_num=4):
    """Deterministic init mimicking PyTorch Linear default U(-1/sqrt(fan_in), +).

    Returns f32 weights already transposed to [in, out] and biases as [1, out]."""
    sizes = []
    last = input_size
    for _ in range(layer_num - 1):
        sizes.append((last, hidden_size))
        last = hidden_size
    sizes.append((last, output_size))

    params = []
    for (fan_in, fan_out) in sizes:
        key, kw, kb = jax.random.split(key, 3)
        bound = 1.0 / jnp.sqrt(float(fan_in))
        w_t = jax.random.uniform(kw, (fan_in, fan_out), jnp.float32, -bound, bound)
        b = jax.random.uniform(kb, (1, fan_out), jnp.float32, -bound, bound)
        params.append((w_t, b))
    return params


def reference_forward(x, params):
    """Pure-JAX f32 reference of the PyTorch forward."""
    h = x
    for i, (w, b) in enumerate(params):
        h = h @ w + b
        if i < len(params) - 1:
            h = jnp.maximum(h, 0.0)
    return h


if __name__ == "__main__":
    key = jax.random.PRNGKey(0)
    key, kx1, kx2 = jax.random.split(key, 3)

    params = init_params(key, INPUT_SIZE, HIDDEN_SIZE, OUTPUT_SIZE, LAYER_NUM)
    packed = pack_params(params)   # one-time bf16 packing (outside the hot path)

    # Case 1: small batch, not a multiple of 8 -> single grid step with a partial
    # tile; exercises OOB-row masking of the final (only) output block.
    batch1 = 200
    x1 = jax.random.normal(kx1, (batch1, INPUT_SIZE), jnp.float32)
    out1 = jax.block_until_ready(net_forward(x1, packed))
    ref1 = reference_forward(x1, params)
    assert out1.shape == (batch1, OUTPUT_SIZE), out1.shape
    assert jnp.allclose(out1, ref1, atol=2e-2, rtol=2e-2), "mismatch vs reference (case 1)"

    # Case 2: multi-tile grid with a trailing partial tile (640 rows @ block_b=256).
    batch2 = 640
    x2 = jax.random.normal(kx2, (batch2, INPUT_SIZE), jnp.float32)
    out2 = jax.block_until_ready(net_forward(x2, packed, block_b=256))
    ref2 = reference_forward(x2, params)
    assert out2.shape == (batch2, OUTPUT_SIZE), out2.shape
    assert jnp.allclose(out2, ref2, atol=2e-2, rtol=2e-2), "mismatch vs reference (case 2)"

    print("KERNEL_OK")
</pallas_src>

<mosaic_0001>
module attributes {stable_mosaic.version = 11 : i64} {
  func.func @_mlp_kernel(%arg0: i32, %arg1: memref<200x32xf32, #tpu.memory_space<vmem>>, %arg2: memref<32x128xbf16, #tpu.memory_space<vmem>>, %arg3: memref<1x128xf32, #tpu.memory_space<vmem>>, %arg4: memref<128x128xbf16, #tpu.memory_space<vmem>>, %arg5: memref<1x128xf32, #tpu.memory_space<vmem>>, %arg6: memref<128x128xbf16, #tpu.memory_space<vmem>>, %arg7: memref<1x128xf32, #tpu.memory_space<vmem>>, %arg8: memref<128x16xbf16, #tpu.memory_space<vmem>>, %arg9: memref<1x16xf32, #tpu.memory_space<vmem>>, %arg10: memref<200x16xf32, #tpu.memory_space<vmem>>) attributes {dimension_semantics = [#tpu.dimension_semantics<parallel>], iteration_bounds = array<i64: 1>, scalar_prefetch = 0 : i64, scratch_operands = 0 : i64, tpu.core_type = #tpu.core_type<tc>, window_params = [{transform_indices = @transform_0, window_bounds = array<i64: 200, 32>}, {pipeline_mode = #tpu.pipeline_mode<synchronous>, transform_indices = @transform_1, window_bounds = array<i64: 32, 128>}, {pipeline_mode = #tpu.pipeline_mode<synchronous>, transform_indices = @transform_2, window_bounds = array<i64: 1, 128>}, {pipeline_mode = #tpu.pipeline_mode<synchronous>, transform_indices = @transform_3, window_bounds = array<i64: 128, 128>}, {pipeline_mode = #tpu.pipeline_mode<synchronous>, transform_indices = @transform_4, window_bounds = array<i64: 1, 128>}, {pipeline_mode = #tpu.pipeline_mode<synchronous>, transform_indices = @transform_5, window_bounds = array<i64: 128, 128>}, {pipeline_mode = #tpu.pipeline_mode<synchronous>, transform_indices = @transform_6, window_bounds = array<i64: 1, 128>}, {pipeline_mode = #tpu.pipeline_mode<synchronous>, transform_indices = @transform_7, window_bounds = array<i64: 128, 16>}, {pipeline_mode = #tpu.pipeline_mode<synchronous>, transform_indices = @transform_8, window_bounds = array<i64: 1, 16>}, {transform_indices = @transform_9, window_bounds = array<i64: 200, 16>}]} {
    %c0 = arith.constant 0 : index
    %c0_0 = arith.constant 0 : index
    %0 = vector.load %arg1[%c0, %c0_0] : memref<200x32xf32, #tpu.memory_space<vmem>>, vector<200x32xf32>
    %1 = arith.truncf %0 : vector<200x32xf32> to vector<200x32xbf16>
    %c0_1 = arith.constant 0 : index
    %c0_2 = arith.constant 0 : index
    %2 = vector.load %arg2[%c0_1, %c0_2] : memref<32x128xbf16, #tpu.memory_space<vmem>>, vector<32x128xbf16>
    %cst = arith.constant dense<0.000000e+00> : vector<200x128xf32>
    %3 = tpu.matmul %1, %2, %cst {dimension_numbers = #tpu.dot_dimension_numbers<[1], [0], [0], [1], [0, 0, 1, 1], [], []>} : vector<200x32xbf16>, vector<32x128xbf16>, vector<200x128xf32> -> vector<200x128xf32>
    %c0_3 = arith.constant 0 : index
    %c0_4 = arith.constant 0 : index
    %4 = vector.load %arg3[%c0_3, %c0_4] : memref<1x128xf32, #tpu.memory_space<vmem>>, vector<1x128xf32>
    %5 = vector.broadcast %4 : vector<1x128xf32> to vector<200x128xf32>
    %6 = arith.addf %3, %5 : vector<200x128xf32>
    %cst_5 = arith.constant 0.000000e+00 : f32
    %7 = vector.broadcast %cst_5 : f32 to vector<200x128xf32>
    %8 = arith.maximumf %6, %7 : vector<200x128xf32>
    %9 = arith.truncf %8 : vector<200x128xf32> to vector<200x128xbf16>
    %c0_6 = arith.constant 0 : index
    %c0_7 = arith.constant 0 : index
    %10 = vector.load %arg4[%c0_6, %c0_7] : memref<128x128xbf16, #tpu.memory_space<vmem>>, vector<128x128xbf16>
    %cst_8 = arith.constant dense<0.000000e+00> : vector<200x128xf32>
    %11 = tpu.matmul %9, %10, %cst_8 {dimension_numbers = #tpu.dot_dimension_numbers<[1], [0], [0], [1], [0, 0, 1, 1], [], []>} : vector<200x128xbf16>, vector<128x128xbf16>, vector<200x128xf32> -> vector<200x128xf32>
    %c0_9 = arith.constant 0 : index
    %c0_10 = arith.constant 0 : index
    %12 = vector.load %arg5[%c0_9, %c0_10] : memref<1x128xf32, #tpu.memory_space<vmem>>, vector<1x128xf32>
    %13 = vector.broadcast %12 : vector<1x128xf32> to vector<200x128xf32>
    %14 = arith.addf %11, %13 : vector<200x128xf32>
    %cst_11 = arith.constant 0.000000e+00 : f32
    %15 = vector.broadcast %cst_11 : f32 to vector<200x128xf32>
    %16 = arith.maximumf %14, %15 : vector<200x128xf32>
    %17 = arith.truncf %16 : vector<200x128xf32> to vector<200x128xbf16>
    %c0_12 = arith.constant 0 : index
    %c0_13 = arith.constant 0 : index
    %18 = vector.load %arg6[%c0_12, %c0_13] : memref<128x128xbf16, #tpu.memory_space<vmem>>, vector<128x128xbf16>
    %cst_14 = arith.constant dense<0.000000e+00> : vector<200x128xf32>
    %19 = tpu.matmul %17, %18, %cst_14 {dimension_numbers = #tpu.dot_dimension_numbers<[1], [0], [0], [1], [0, 0, 1, 1], [], []>} : vector<200x128xbf16>, vector<128x128xbf16>, vector<200x128xf32> -> vector<200x128xf32>
    %c0_15 = arith.constant 0 : index
    %c0_16 = arith.constant 0 : index
    %20 = vector.load %arg7[%c0_15, %c0_16] : memref<1x128xf32, #tpu.memory_space<vmem>>, vector<1x128xf32>
    %21 = vector.broadcast %20 : vector<1x128xf32> to vector<200x128xf32>
    %22 = arith.addf %19, %21 : vector<200x128xf32>
    %cst_17 = arith.constant 0.000000e+00 : f32
    %23 = vector.broadcast %cst_17 : f32 to vector<200x128xf32>
    %24 = arith.maximumf %22, %23 : vector<200x128xf32>
    %25 = arith.truncf %24 : vector<200x128xf32> to vector<200x128xbf16>
    %c0_18 = arith.constant 0 : index
    %c0_19 = arith.constant 0 : index
    %26 = vector.load %arg8[%c0_18, %c0_19] : memref<128x16xbf16, #tpu.memory_space<vmem>>, vector<128x16xbf16>
    %cst_20 = arith.constant dense<0.000000e+00> : vector<200x16xf32>
    %27 = tpu.matmul %25, %26, %cst_20 {dimension_numbers = #tpu.dot_dimension_numbers<[1], [0], [0], [1], [0, 0, 1, 1], [], []>} : vector<200x128xbf16>, vector<128x16xbf16>, vector<200x16xf32> -> vector<200x16xf32>
    %c0_21 = arith.constant 0 : index
    %c0_22 = arith.constant 0 : index
    %28 = vector.load %arg9[%c0_21, %c0_22] : memref<1x16xf32, #tpu.memory_space<vmem>>, vector<1x16xf32>
    %29 = vector.broadcast %28 : vector<1x16xf32> to vector<200x16xf32>
    %30 = arith.addf %27, %29 : vector<200x16xf32>
    %c0_23 = arith.constant 0 : index
    %c0_24 = arith.constant 0 : index
    %31 = vector.load %arg10[%c0_23, %c0_24] : memref<200x16xf32, #tpu.memory_space<vmem>>, vector<200x16xf32>
    tpu.vector_store %arg10[%c0_23, %c0_24], %30 {strides = array<i32>} : memref<200x16xf32, #tpu.memory_space<vmem>>, vector<200x16xf32>,
    return
  }
  func.func @transform_0(%arg0: i32) -> (i32, i32) {
    %c0_i32 = arith.constant 0 : i32
    %c0_i32_0 = arith.constant 0 : i32
    return %arg0, %c0_i32 : i32, i32
  }
  func.func @transform_1(%arg0: i32) -> (i32, i32) {
    %c0_i32 = arith.constant 0 : i32
    %c0_i32_0 = arith.constant 0 : i32
    %c0_i32_1 = arith.constant 0 : i32
    return %c0_i32, %c0_i32_0 : i32, i32
  }
  func.func @transform_2(%arg0: i32) -> (i32, i32) {
    %c0_i32 = arith.constant 0 : i32
    %c0_i32_0 = arith.constant 0 : i32
    %c0_i32_1 = arith.constant 0 : i32
    return %c0_i32, %c0_i32_0 : i32, i32
  }
  func.func @transform_3(%arg0: i32) -> (i32, i32) {
    %c0_i32 = arith.constant 0 : i32
    %c0_i32_0 = arith.constant 0 : i32
    %c0_i32_1 = arith.constant 0 : i32
    return %c0_i32, %c0_i32_0 : i32, i32
  }
  func.func @transform_4(%arg0: i32) -> (i32, i32) {
    %c0_i32 = arith.constant 0 : i32
    %c0_i32_0 = arith.constant 0 : i32
    %c0_i32_1 = arith.constant 0 : i32
    return %c0_i32, %c0_i32_0 : i32, i32
  }
  func.func @transform_5(%arg0: i32) -> (i32, i32) {
    %c0_i32 = arith.constant 0 : i32
    %c0_i32_0 = arith.constant 0 : i32
    %c0_i32_1 = arith.constant 0 : i32
    return %c0_i32, %c0_i32_0 : i32, i32
  }
  func.func @transform_6(%arg0: i32) -> (i32, i32) {
    %c0_i32 = arith.constant 0 : i32
    %c0_i32_0 = arith.constant 0 : i32
    %c0_i32_1 = arith.constant 0 : i32
    return %c0_i32, %c0_i32_0 : i32, i32
  }
  func.func @transform_7(%arg0: i32) -> (i32, i32) {
    %c0_i32 = arith.constant 0 : i32
    %c0_i32_0 = arith.constant 0 : i32
    %c0_i32_1 = arith.constant 0 : i32
    return %c0_i32, %c0_i32_0 : i32, i32
  }
  func.func @transform_8(%arg0: i32) -> (i32, i32) {
    %c0_i32 = arith.constant 0 : i32
    %c0_i32_0 = arith.constant 0 : i32
    %c0_i32_1 = arith.constant 0 : i32
    return %c0_i32, %c0_i32_0 : i32, i32
  }
  func.func @transform_9(%arg0: i32) -> (i32, i32) {
    %c0_i32 = arith.constant 0 : i32
    %c0_i32_0 = arith.constant 0 : i32
    return %arg0, %c0_i32 : i32, i32
  }
}

</mosaic_0001>

<llo_original>
// kernel: tpu_custom_call.1
$region0: #{tpu_custom_call.1}
  #allocation0 [shape = 'u32[]', space=smem, size = 0x4, offset = 0x4, fixed_abs, tag = 'smem constant byte address 0x4 - core index']
  #allocation1 [shape = 'u32[144,128]{1,0:T(1,128)}', space=vmem, size = 0x12000, scoped, tag = 'internal scratch']
  %s0 = inlined_call_operand.vmem [shape: f32[200,32], index: 0, kind: input, shape index: {}]
  %s1 = inlined_call_operand.vmem [shape: bf16[32,128], index: 1, kind: input, shape index: {}]
  %s2 = inlined_call_operand.vmem [shape: f32[1,128], index: 2, kind: input, shape index: {}]
  %s3 = inlined_call_operand.vmem [shape: bf16[128,128], index: 3, kind: input, shape index: {}]
  %s4 = inlined_call_operand.vmem [shape: f32[1,128], index: 4, kind: input, shape index: {}]
  %s5 = inlined_call_operand.vmem [shape: bf16[128,128], index: 5, kind: input, shape index: {}]
  %s6 = inlined_call_operand.vmem [shape: f32[1,128], index: 6, kind: input, shape index: {}]
  %s7 = inlined_call_operand.vmem [shape: bf16[128,16], index: 7, kind: input, shape index: {}]
  %s8 = inlined_call_operand.vmem [shape: f32[1,16], index: 8, kind: input, shape index: {}]
  %s9 = inlined_call_operand.vmem [shape: f32[200,16], index: 9, kind: output, shape index: {}]
  %s10 = sld [smem:[#allocation0]]
  $region46: #{tpu_custom_call.1} parent=0
    _
  %s12 = ssub.s32 1, %s10
  %s13 = scalar_select 0, %s12, %s10
  // Predicated region
  $region2: #{tpu_custom_call.1} parent=0 // pred_check
    _
  $region3: #{tpu_custom_call.1} parent=0 // pred_check_branch
    %15 = sbr.rel (0) target = $region5
  $region4: #{tpu_custom_call.1} parent=0 // pred_region
    _
  $region5: #{tpu_custom_call.1} parent=0 // pred_fallthru
    _
  // Predicated region
  $region6: #{tpu_custom_call.1} parent=0 // pred_check
    _
  $region7: #{tpu_custom_call.1} parent=0 // pred_check_branch
    %17 = sbr.rel (0) target = $region9
  $region8: #{tpu_custom_call.1} parent=0 // pred_region
    _
  $region9: #{tpu_custom_call.1} parent=0 // pred_fallthru
    _
  // Predicated region
  $region10: #{tpu_custom_call.1} parent=0 // pred_check
    _
  $region11: #{tpu_custom_call.1} parent=0 // pred_check_branch
    %19 = sbr.rel (0) target = $region13
  $region12: #{tpu_custom_call.1} parent=0 // pred_region
    _
  $region13: #{tpu_custom_call.1} parent=0 // pred_fallthru
    _
  // Predicated region
  $region14: #{tpu_custom_call.1} parent=0 // pred_check
    _
  $region15: #{tpu_custom_call.1} parent=0 // pred_check_branch
    %21 = sbr.rel (0) target = $region17
  $region16: #{tpu_custom_call.1} parent=0 // pred_region
    _
  $region17: #{tpu_custom_call.1} parent=0 // pred_fallthru
    _
  // Predicated region
  $region18: #{tpu_custom_call.1} parent=0 // pred_check
    _
  $region19: #{tpu_custom_call.1} parent=0 // pred_check_branch
    %23 = sbr.rel (0) target = $region21
  $region20: #{tpu_custom_call.1} parent=0 // pred_region
    _
  $region21: #{tpu_custom_call.1} parent=0 // pred_fallthru
    _
  // Predicated region
  $region22: #{tpu_custom_call.1} parent=0 // pred_check
    _
  $region23: #{tpu_custom_call.1} parent=0 // pred_check_branch
    %25 = sbr.rel (0) target = $region25
  $region24: #{tpu_custom_call.1} parent=0 // pred_region
    _
  $region25: #{tpu_custom_call.1} parent=0 // pred_fallthru
    _
  // Predicated region
  $region26: #{tpu_custom_call.1} parent=0 // pred_check
    _
  $region27: #{tpu_custom_call.1} parent=0 // pred_check_branch
    %27 = sbr.rel (0) target = $region29
  $region28: #{tpu_custom_call.1} parent=0 // pred_region
    _
  $region29: #{tpu_custom_call.1} parent=0 // pred_fallthru
    _
  // Predicated region
  $region30: #{tpu_custom_call.1} parent=0 // pred_check
    _
  $region31: #{tpu_custom_call.1} parent=0 // pred_check_branch
    %29 = sbr.rel (0) target = $region33
  $region32: #{tpu_custom_call.1} parent=0 // pred_region
    _
  $region33: #{tpu_custom_call.1} parent=0 // pred_fallthru
    _
  // Predicated region
  $region34: #{tpu_custom_call.1} parent=0 // pred_check
    _
  $region35: #{tpu_custom_call.1} parent=0 // pred_check_branch
    %31 = sbr.rel (0) target = $region37
  $region36: #{tpu_custom_call.1} parent=0 // pred_region
    _
  $region37: #{tpu_custom_call.1} parent=0 // pred_fallthru
    _
  %v33 = vld [vmem:[%s0] sm:$0xff]
  %v34 = vld [vmem:[%s0 + $0x8] sm:$0xff]
  %v35 = vld [vmem:[%s0 + $0x10] sm:$0xff]
  %v36 = vld [vmem:[%s0 + $0x18] sm:$0xff]
  %v37 = vld [vmem:[%s0 + $0x20] sm:$0xff]
  %v38 = vld [vmem:[%s0 + $0x28] sm:$0xff]
  %v39 = vld [vmem:[%s0 + $0x30] sm:$0xff]
  %v40 = vld [vmem:[%s0 + $0x38] sm:$0xff]
  %v41 = vld [vmem:[%s0 + $0x40] sm:$0xff]
  %v42 = vld [vmem:[%s0 + $0x48] sm:$0xff]
  %v43 = vld [vmem:[%s0 + $0x50] sm:$0xff]
  %v44 = vld [vmem:[%s0 + $0x58] sm:$0xff]
  %v45 = vld [vmem:[%s0 + $0x60] sm:$0xff]
  %v46 = vld [vmem:[%s0 + $0x68] sm:$0xff]
  %v47 = vld [vmem:[%s0 + $0x70] sm:$0xff]
  %v48 = vld [vmem:[%s0 + $0x78] sm:$0xff]
  %v49 = vld [vmem:[%s0 + $0x80] sm:$0xff]
  %v50 = vld [vmem:[%s0 + $0x88] sm:$0xff]
  %v51 = vld [vmem:[%s0 + $0x90] sm:$0xff]
  %v52 = vld [vmem:[%s0 + $0x98] sm:$0xff]
  %v53 = vld [vmem:[%s0 + $0xa0] sm:$0xff]
  %v54 = vld [vmem:[%s0 + $0xa8] sm:$0xff]
  %v55 = vld [vmem:[%s0 + $0xb0] sm:$0xff]
  %v56 = vld [vmem:[%s0 + $0xb8] sm:$0xff]
  %v57 = vld [vmem:[%s0 + $0xc0] sm:$0xff]
  %v58 = vpack.c.bf16 %v34, %v33
  %v59 = vpack.c.bf16 %v36, %v35
  %v60 = vpack.c.bf16 %v38, %v37
  %v61 = vpack.c.bf16 %v40, %v39
  %v62 = vpack.c.bf16 %v42, %v41
  %v63 = vpack.c.bf16 %v44, %v43
  %v64 = vpack.c.bf16 %v46, %v45
  %v65 = vpack.c.bf16 %v48, %v47
  %v66 = vpack.c.bf16 %v50, %v49
  %v67 = vpack.c.bf16 %v52, %v51
  %v68 = vpack.c.bf16 %v54, %v53
  %v69 = vpack.c.bf16 %v56, %v55
  %v70 = vpack.c.bf16 %v57, %v57
  %v71 = vld [vmem:[%s1] sm:$0xf]
  %v72 = vld [vmem:[%s1 + $0x4] sm:$0xf]
  %v73 = vld [vmem:[%s1 + $0x8] sm:$0xf]
  %v74 = vld [vmem:[%s1 + $0xc] sm:$0xf]
  %v75 = vld [vmem:[%s2] sm:$0x1]
  %v77 = vlaneseq
  %v78 = vshrl.u32 %v77, 7
  %v79 = vsub.s32 0, %v78
  %v80 = vrot.slane %v75, %v79
  %v86 = vunpack.c.l.b16 %v71
  %v87 = vunpack.c.l.b16 %v72
  %v88 = vunpack.c.l.b16 %v73
  %v89 = vunpack.c.l.b16 %v74
  %v90 = vpack.c.b16 %v87, %v86
  %v91 = vpack.c.b16 %v89, %v88
  %vm94 = vcmask 261120
  %v96 = vsel %vm94, %v58, 0
  %v99 = vsel %vm94, %v59, 0
  %v102 = vsel %vm94, %v60, 0
  %v105 = vsel %vm94, %v61, 0
  %v108 = vsel %vm94, %v62, 0
  %v111 = vsel %vm94, %v63, 0
  %v114 = vsel %vm94, %v64, 0
  %v117 = vsel %vm94, %v65, 0
  %v120 = vsel %vm94, %v66, 0
  %v123 = vsel %vm94, %v67, 0
  %v126 = vsel %vm94, %v68, 0
  %v129 = vsel %vm94, %v69, 0
  %v132 = vsel %vm94, %v70, 0
  %134 = vmatprep.subr.bf16.mxu0 0
  %135 = vmatpush1.bf16.msra.mxu0 0
  %136 = vmatprep.subr.bf16.mxu0 0
  %137 = vmatpush1.bf16.msra.mxu0 0
  %138 = vmatprep.subr.bf16.mxu0 0
  %139 = vmatpush1.bf16.msra.mxu0 0
  %140 = vmatprep.subr.bf16.mxu0 0
  %141 = vmatpush1.bf16.msra.mxu0 0
  %142 = vmatprep.subr.bf16.mxu0 0
  %143 = vmatpush1.bf16.msra.mxu0 0
  %144 = vmatprep.subr.bf16.mxu0 0
  %145 = vmatpush1.bf16.msra.mxu0 0
  %146 = vmatprep.subr.bf16.mxu0 0
  %147 = vmatpush1.bf16.msra.mxu0 %v91
  %148 = vmatprep.subr.bf16.mxu0 0
  %149 = vmatpush1.bf16.msra.mxu0 %v90
  %150 = vmatprep.subr.bf16.mxu0 0
  %151 = vmatpush2.bf16.msra.mxu0 0
  %152 = vmatprep.subr.bf16.mxu0 0
  %153 = vmatpush2.bf16.msra.mxu0 0
  %154 = vmatprep.subr.bf16.mxu0 0
  %155 = vmatpush2.bf16.msra.mxu0 0
  %156 = vmatprep.subr.bf16.mxu0 0
  %157 = vmatpush2.bf16.msra.mxu0 0
  %158 = vmatprep.subr.bf16.mxu0 0
  %159 = vmatpush2.bf16.msra.mxu0 0
  %160 = vmatprep.subr.bf16.mxu0 0
  %161 = vmatpush2.bf16.msra.mxu0 0
  %162 = vmatprep.subr.bf16.mxu0 0
  %163 = vmatpush2.bf16.msra.mxu0 0
  %164 = vmatprep.subr.bf16.mxu0 0
  %165 = vmatpush2.bf16.msra.mxu0 0
  %166 = vmatprep.mubr.bf16.mxu0 0
  %167 = vmatmul.mubr.bf16.gmra.mxu0 %v96
  %v168 = vpop.f32.mrf.mxu0
  %v169 = vadd.f32 %v80, %v168
  %v170 = vpop.f32.mrf.mxu0
  %v171 = vpop.f32.mrf.mxu0
  %v172 = vadd.f32 %v80, %v171
  %v173 = vpop.f32.mrf.mxu0
  %174 = vmatprep.mubr.bf16.mxu0 0
  %175 = vmatmul.mubr.bf16.gmra.mxu0 %v99
  %v176 = vpop.f32.mrf.mxu0
  %v177 = vadd.f32 %v80, %v176
  %v178 = vpop.f32.mrf.mxu0
  %v179 = vpop.f32.mrf.mxu0
  %v180 = vadd.f32 %v80, %v179
  %v181 = vpop.f32.mrf.mxu0
  %182 = vmatprep.mubr.bf16.mxu0 0
  %183 = vmatmul.mubr.bf16.gmra.mxu0 %v102
  %v184 = vpop.f32.mrf.mxu0
  %v185 = vadd.f32 %v80, %v184
  %v186 = vpop.f32.mrf.mxu0
  %v187 = vpop.f32.mrf.mxu0
  %v188 = vadd.f32 %v80, %v187
  %v189 = vpop.f32.mrf.mxu0
  %190 = vmatprep.mubr.bf16.mxu0 0
  %191 = vmatmul.mubr.bf16.gmra.mxu0 %v105
  %v192 = vpop.f32.mrf.mxu0
  %v193 = vadd.f32 %v80, %v192
  %v194 = vpop.f32.mrf.mxu0
  %v195 = vpop.f32.mrf.mxu0
  %v196 = vadd.f32 %v80, %v195
  %v197 = vpop.f32.mrf.mxu0
  %198 = vmatprep.mubr.bf16.mxu0 0
  %199 = vmatmul.mubr.bf16.gmra.mxu0 %v108
  %v200 = vpop.f32.mrf.mxu0
  %v201 = vadd.f32 %v80, %v200
  %v202 = vpop.f32.mrf.mxu0
  %v203 = vpop.f32.mrf.mxu0
  %v204 = vadd.f32 %v80, %v203
  %v205 = vpop.f32.mrf.mxu0
  %206 = vmatprep.mubr.bf16.mxu0 0
  %207 = vmatmul.mubr.bf16.gmra.mxu0 %v111
  %v208 = vpop.f32.mrf.mxu0
  %v209 = vadd.f32 %v80, %v208
  %v210 = vpop.f32.mrf.mxu0
  %v211 = vpop.f32.mrf.mxu0
  %v212 = vadd.f32 %v80, %v211
  %v213 = vpop.f32.mrf.mxu0
  %214 = vmatprep.mubr.bf16.mxu0 0
  %215 = vmatmul.mubr.bf16.gmra.mxu0 %v114
  %v216 = vpop.f32.mrf.mxu0
  %v217 = vadd.f32 %v80, %v216
  %v218 = vpop.f32.mrf.mxu0
  %v219 = vpop.f32.mrf.mxu0
  %v220 = vadd.f32 %v80, %v219
  %v221 = vpop.f32.mrf.mxu0
  %222 = vmatprep.mubr.bf16.mxu0 0
  %223 = vmatmul.mubr.bf16.gmra.mxu0 %v117
  %v224 = vpop.f32.mrf.mxu0
  %v225 = vadd.f32 %v80, %v224
  %v226 = vpop.f32.mrf.mxu0
  %v227 = vpop.f32.mrf.mxu0
  %v228 = vadd.f32 %v80, %v227
  %v229 = vpop.f32.mrf.mxu0
  %230 = vmatprep.mubr.bf16.mxu0 0
  %231 = vmatmul.mubr.bf16.gmra.mxu0 %v120
  %v232 = vpop.f32.mrf.mxu0
  %v233 = vadd.f32 %v80, %v232
  %v234 = vpop.f32.mrf.mxu0
  %v235 = vpop.f32.mrf.mxu0
  %v236 = vadd.f32 %v80, %v235
  %v237 = vpop.f32.mrf.mxu0
  %238 = vmatprep.mubr.bf16.mxu0 0
  %239 = vmatmul.mubr.bf16.gmra.mxu0 %v123
  %v240 = vpop.f32.mrf.mxu0
  %v241 = vadd.f32 %v80, %v240
  %v242 = vpop.f32.mrf.mxu0
  %v243 = vpop.f32.mrf.mxu0
  %v244 = vadd.f32 %v80, %v243
  %v245 = vpop.f32.mrf.mxu0
  %246 = vmatprep.mubr.bf16.mxu0 0
  %247 = vmatmul.mubr.bf16.gmra.mxu0 %v126
  %v248 = vpop.f32.mrf.mxu0
  %v249 = vadd.f32 %v80, %v248
  %v250 = vpop.f32.mrf.mxu0
  %v251 = vpop.f32.mrf.mxu0
  %v252 = vadd.f32 %v80, %v251
  %v253 = vpop.f32.mrf.mxu0
  %254 = vmatprep.mubr.bf16.mxu0 0
  %255 = vmatmul.mubr.bf16.gmra.mxu0 %v129
  %v256 = vpop.f32.mrf.mxu0
  %v257 = vadd.f32 %v80, %v256
  %v258 = vpop.f32.mrf.mxu0
  %v259 = vpop.f32.mrf.mxu0
  %v260 = vadd.f32 %v80, %v259
  %v261 = vpop.f32.mrf.mxu0
  %262 = vmatprep.mubr.bf16.mxu0 0
  %263 = vmatmul.mubr.bf16.gmra.mxu0 %v132
  %v264 = vpop.f32.mrf.mxu0
  %v265 = vadd.f32 %v80, %v264
  %v266 = vpop.f32.mrf.mxu0
  %v267 = vpop.f32.mrf.mxu0
  %v268 = vpop.f32.mrf.mxu0
  %269 = vdwg.mxu0
  %v270 = vmax.f32 %v169, 0.0
  %v271 = vmax.f32 %v172, 0.0
  %v272 = vmax.f32 %v177, 0.0
  %v273 = vmax.f32 %v180, 0.0
  %v274 = vmax.f32 %v185, 0.0
  %v275 = vmax.f32 %v188, 0.0
  %v276 = vmax.f32 %v193, 0.0
  %v277 = vmax.f32 %v196, 0.0
  %v278 = vmax.f32 %v201, 0.0
  %v279 = vmax.f32 %v204, 0.0
  %v280 = vmax.f32 %v209, 0.0
  %v281 = vmax.f32 %v212, 0.0
  %v282 = vmax.f32 %v217, 0.0
  %v283 = vmax.f32 %v220, 0.0
  %v284 = vmax.f32 %v225, 0.0
  %v285 = vmax.f32 %v228, 0.0
  %v286 = vmax.f32 %v233, 0.0
  %v287 = vmax.f32 %v236, 0.0
  %v288 = vmax.f32 %v241, 0.0
  %v289 = vmax.f32 %v244, 0.0
  %v290 = vmax.f32 %v249, 0.0
  %v291 = vmax.f32 %v252, 0.0
  %v292 = vmax.f32 %v257, 0.0
  %v293 = vmax.f32 %v260, 0.0
  %v294 = vmax.f32 %v265, 0.0
  %v295 = vpack.c.bf16 %v271, %v270
  %v296 = vpack.c.bf16 %v273, %v272
  %v297 = vpack.c.bf16 %v275, %v274
  %v298 = vpack.c.bf16 %v277, %v276
  %v299 = vpack.c.bf16 %v279, %v278
  %v300 = vpack.c.bf16 %v281, %v280
  %v301 = vpack.c.bf16 %v283, %v282
  %v302 = vpack.c.bf16 %v285, %v284
  %v303 = vpack.c.bf16 %v287, %v286
  %v304 = vpack.c.bf16 %v289, %v288
  %v305 = vpack.c.bf16 %v291, %v290
  %v306 = vpack.c.bf16 %v293, %v292
  %v307 = vpack.c.bf16 %v294, %v294
  %v308 = vld [vmem:[%s3] sm:$0xf]
  %v309 = vld [vmem:[%s3 + $0x4] sm:$0xf]
  %v310 = vld [vmem:[%s3 + $0x8] sm:$0xf]
  %v311 = vld [vmem:[%s3 + $0xc] sm:$0xf]
  %v312 = vld [vmem:[%s3 + $0x10] sm:$0xf]
  %v313 = vld [vmem:[%s3 + $0x14] sm:$0xf]
  %v314 = vld [vmem:[%s3 + $0x18] sm:$0xf]
  %v315 = vld [vmem:[%s3 + $0x1c] sm:$0xf]
  %v316 = vld [vmem:[%s3 + $0x20] sm:$0xf]
  %v317 = vld [vmem:[%s3 + $0x24] sm:$0xf]
  %v318 = vld [vmem:[%s3 + $0x28] sm:$0xf]
  %v319 = vld [vmem:[%s3 + $0x2c] sm:$0xf]
  %v320 = vld [vmem:[%s3 + $0x30] sm:$0xf]
  %v321 = vld [vmem:[%s3 + $0x34] sm:$0xf]
  %v322 = vld [vmem:[%s3 + $0x38] sm:$0xf]
  %v323 = vld [vmem:[%s3 + $0x3c] sm:$0xf]
  %v324 = vld [vmem:[%s4] sm:$0x1]
  %v326 = vlaneseq
  %v327 = vshrl.u32 %v326, 7
  %v328 = vsub.s32 0, %v327
  %v329 = vrot.slane %v324, %v328
  %v347 = vunpack.c.l.b16 %v308
  %v348 = vunpack.c.l.b16 %v309
  %v349 = vunpack.c.l.b16 %v310
  %v350 = vunpack.c.l.b16 %v311
  %v351 = vunpack.c.l.b16 %v312
  %v352 = vunpack.c.l.b16 %v313
  %v353 = vunpack.c.l.b16 %v314
  %v354 = vunpack.c.l.b16 %v315
  %v355 = vunpack.c.l.b16 %v316
  %v356 = vunpack.c.l.b16 %v317
  %v357 = vunpack.c.l.b16 %v318
  %v358 = vunpack.c.l.b16 %v319
  %v359 = vunpack.c.l.b16 %v320
  %v360 = vunpack.c.l.b16 %v321
  %v361 = vunpack.c.l.b16 %v322
  %v362 = vunpack.c.l.b16 %v323
  %v363 = vpack.c.b16 %v348, %v347
  %v364 = vpack.c.b16 %v350, %v349
  %v365 = vpack.c.b16 %v352, %v351
  %v366 = vpack.c.b16 %v354, %v353
  %v367 = vpack.c.b16 %v356, %v355
  %v368 = vpack.c.b16 %v358, %v357
  %v369 = vpack.c.b16 %v360, %v359
  %v370 = vpack.c.b16 %v362, %v361
  %379 = vmatprep.subr.bf16.mxu0 0
  %380 = vmatpush1.bf16.msra.mxu0 %v370
  %381 = vmatprep.subr.bf16.mxu0 0
  %382 = vmatpush1.bf16.msra.mxu0 %v369
  %383 = vmatprep.subr.bf16.mxu0 0
  %384 = vmatpush1.bf16.msra.mxu0 %v368
  %385 = vmatprep.subr.bf16.mxu0 0
  %386 = vmatpush1.bf16.msra.mxu0 %v367
  %387 = vmatprep.subr.bf16.mxu0 0
  %388 = vmatpush1.bf16.msra.mxu0 %v366
  %389 = vmatprep.subr.bf16.mxu0 0
  %390 = vmatpush1.bf16.msra.mxu0 %v365
  %391 = vmatprep.subr.bf16.mxu0 0
  %392 = vmatpush1.bf16.msra.mxu0 %v364
  %393 = vmatprep.subr.bf16.mxu0 0
  %394 = vmatpush1.bf16.msra.mxu0 %v363
  %395 = vmatprep.subr.bf16.mxu0 0
  %396 = vmatpush2.bf16.msra.mxu0 0
  %397 = vmatprep.subr.bf16.mxu0 0
  %398 = vmatpush2.bf16.msra.mxu0 0
  %399 = vmatprep.subr.bf16.mxu0 0
  %400 = vmatpush2.bf16.msra.mxu0 0
  %401 = vmatprep.subr.bf16.mxu0 0
  %402 = vmatpush2.bf16.msra.mxu0 0
  %403 = vmatprep.subr.bf16.mxu0 0
  %404 = vmatpush2.bf16.msra.mxu0 0
  %405 = vmatprep.subr.bf16.mxu0 0
  %406 = vmatpush2.bf16.msra.mxu0 0
  %407 = vmatprep.subr.bf16.mxu0 0
  %408 = vmatpush2.bf16.msra.mxu0 0
  %409 = vmatprep.subr.bf16.mxu0 0
  %410 = vmatpush2.bf16.msra.mxu0 0
  %411 = vmatprep.mubr.bf16.mxu0 0
  %412 = vmatmul.mubr.bf16.gmra.mxu0 %v295
  %v413 = vpop.f32.mrf.mxu0
  %v414 = vadd.f32 %v329, %v413
  %v415 = vpop.f32.mrf.mxu0
  %v416 = vpop.f32.mrf.mxu0
  %v417 = vadd.f32 %v329, %v416
  %v418 = vpop.f32.mrf.mxu0
  %419 = vmatprep.mubr.bf16.mxu0 0
  %420 = vmatmul.mubr.bf16.gmra.mxu0 %v296
  %v421 = vpop.f32.mrf.mxu0
  %v422 = vadd.f32 %v329, %v421
  %v423 = vpop.f32.mrf.mxu0
  %v424 = vpop.f32.mrf.mxu0
  %v425 = vadd.f32 %v329, %v424
  %v426 = vpop.f32.mrf.mxu0
  %427 = vmatprep.mubr.bf16.mxu0 0
  %428 = vmatmul.mubr.bf16.gmra.mxu0 %v297
  %v429 = vpop.f32.mrf.mxu0
  %v430 = vadd.f32 %v329, %v429
  %v431 = vpop.f32.mrf.mxu0
  %v432 = vpop.f32.mrf.mxu0
  %v433 = vadd.f32 %v329, %v432
  %v434 = vpop.f32.mrf.mxu0
  %435 = vmatprep.mubr.bf16.mxu0 0
  %436 = vmatmul.mubr.bf16.gmra.mxu0 %v298
  %v437 = vpop.f32.mrf.mxu0
  %v438 = vadd.f32 %v329, %v437
  %v439 = vpop.f32.mrf.mxu0
  %v440 = vpop.f32.mrf.mxu0
  %v441 = vadd.f32 %v329, %v440
  %v442 = vpop.f32.mrf.mxu0
  %443 = vmatprep.mubr.bf16.mxu0 0
  %444 = vmatmul.mubr.bf16.gmra.mxu0 %v299
  %v445 = vpop.f32.mrf.mxu0
  %v446 = vadd.f32 %v329, %v445
  %v447 = vpop.f32.mrf.mxu0
  %v448 = vpop.f32.mrf.mxu0
  %v449 = vadd.f32 %v329, %v448
  %v450 = vpop.f32.mrf.mxu0
  %451 = vmatprep.mubr.bf16.mxu0 0
  %452 = vmatmul.mubr.bf16.gmra.mxu0 %v300
  %v453 = vpop.f32.mrf.mxu0
  %v454 = vadd.f32 %v329, %v453
  %v455 = vpop.f32.mrf.mxu0
  %v456 = vpop.f32.mrf.mxu0
  %v457 = vadd.f32 %v329, %v456
  %v458 = vpop.f32.mrf.mxu0
  %459 = vmatprep.mubr.bf16.mxu0 0
  %460 = vmatmul.mubr.bf16.gmra.mxu0 %v301
  %v461 = vpop.f32.mrf.mxu0
  %v462 = vadd.f32 %v329, %v461
  %v463 = vpop.f32.mrf.mxu0
  %v464 = vpop.f32.mrf.mxu0
  %v465 = vadd.f32 %v329, %v464
  %v466 = vpop.f32.mrf.mxu0
  %467 = vmatprep.mubr.bf16.mxu0 0
  %468 = vmatmul.mubr.bf16.gmra.mxu0 %v302
  %v469 = vpop.f32.mrf.mxu0
  %v470 = vadd.f32 %v329, %v469
  %v471 = vpop.f32.mrf.mxu0
  %v472 = vpop.f32.mrf.mxu0
  %v473 = vadd.f32 %v329, %v472
  %v474 = vpop.f32.mrf.mxu0
  %475 = vmatprep.mubr.bf16.mxu0 0
  %476 = vmatmul.mubr.bf16.gmra.mxu0 %v303
  %v477 = vpop.f32.mrf.mxu0
  %v478 = vadd.f32 %v329, %v477
  %v479 = vpop.f32.mrf.mxu0
  %v480 = vpop.f32.mrf.mxu0
  %v481 = vadd.f32 %v329, %v480
  %v482 = vpop.f32.mrf.mxu0
  %483 = vmatprep.mubr.bf16.mxu0 0
  %484 = vmatmul.mubr.bf16.gmra.mxu0 %v304
  %v485 = vpop.f32.mrf.mxu0
  %v486 = vadd.f32 %v329, %v485
  %v487 = vpop.f32.mrf.mxu0
  %v488 = vpop.f32.mrf.mxu0
  %v489 = vadd.f32 %v329, %v488
  %v490 = vpop.f32.mrf.mxu0
  %491 = vmatprep.mubr.bf16.mxu0 0
  %492 = vmatmul.mubr.bf16.gmra.mxu0 %v305
  %v493 = vpop.f32.mrf.mxu0
  %v494 = vadd.f32 %v329, %v493
  %v495 = vpop.f32.mrf.mxu0
  %v496 = vpop.f32.mrf.mxu0
  %v497 = vadd.f32 %v329, %v496
  %v498 = vpop.f32.mrf.mxu0
  %499 = vmatprep.mubr.bf16.mxu0 0
  %500 = vmatmul.mubr.bf16.gmra.mxu0 %v306
  %v501 = vpop.f32.mrf.mxu0
  %v502 = vadd.f32 %v329, %v501
  %v503 = vpop.f32.mrf.mxu0
  %v504 = vpop.f32.mrf.mxu0
  %v505 = vadd.f32 %v329, %v504
  %v506 = vpop.f32.mrf.mxu0
  %507 = vmatprep.mubr.bf16.mxu0 0
  %508 = vmatmul.mubr.bf16.gmra.mxu0 %v307
  %v509 = vpop.f32.mrf.mxu0
  %v510 = vadd.f32 %v329, %v509
  %v511 = vpop.f32.mrf.mxu0
  %v512 = vpop.f32.mrf.mxu0
  %v513 = vpop.f32.mrf.mxu0
  %514 = vdwg.mxu0
  %v515 = vmax.f32 %v414, 0.0
  %v516 = vmax.f32 %v417, 0.0
  %v517 = vmax.f32 %v422, 0.0
  %v518 = vmax.f32 %v425, 0.0
  %v519 = vmax.f32 %v430, 0.0
  %v520 = vmax.f32 %v433, 0.0
  %v521 = vmax.f32 %v438, 0.0
  %v522 = vmax.f32 %v441, 0.0
  %v523 = vmax.f32 %v446, 0.0
  %v524 = vmax.f32 %v449, 0.0
  %v525 = vmax.f32 %v454, 0.0
  %v526 = vmax.f32 %v457, 0.0
  %v527 = vmax.f32 %v462, 0.0
  %v528 = vmax.f32 %v465, 0.0
  %v529 = vmax.f32 %v470, 0.0
  %v530 = vmax.f32 %v473, 0.0
  %v531 = vmax.f32 %v478, 0.0
  %v532 = vmax.f32 %v481, 0.0
  %v533 = vmax.f32 %v486, 0.0
  %v534 = vmax.f32 %v489, 0.0
  %v535 = vmax.f32 %v494, 0.0
  %v536 = vmax.f32 %v497, 0.0
  %v537 = vmax.f32 %v502, 0.0
  %v538 = vmax.f32 %v505, 0.0
  %v539 = vmax.f32 %v510, 0.0
  %v540 = vpack.c.bf16 %v516, %v515
  %v541 = vpack.c.bf16 %v518, %v517
  %v542 = vpack.c.bf16 %v520, %v519
  %v543 = vpack.c.bf16 %v522, %v521
  %v544 = vpack.c.bf16 %v524, %v523
  %v545 = vpack.c.bf16 %v526, %v525
  %v546 = vpack.c.bf16 %v528, %v527
  %v547 = vpack.c.bf16 %v530, %v529
  %v548 = vpack.c.bf16 %v532, %v531
  %v549 = vpack.c.bf16 %v534, %v533
  %v550 = vpack.c.bf16 %v536, %v535
  %v551 = vpack.c.bf16 %v538, %v537
  %v552 = vpack.c.bf16 %v539, %v539
  %v553 = vld [vmem:[%s5] sm:$0xf]
  %v554 = vld [vmem:[%s5 + $0x4] sm:$0xf]
  %v555 = vld [vmem:[%s5 + $0x8] sm:$0xf]
  %v556 = vld [vmem:[%s5 + $0xc] sm:$0xf]
  %v557 = vld [vmem:[%s5 + $0x10] sm:$0xf]
  %v558 = vld [vmem:[%s5 + $0x14] sm:$0xf]
  %v559 = vld [vmem:[%s5 + $0x18] sm:$0xf]
  %v560 = vld [vmem:[%s5 + $0x1c] sm:$0xf]
  %v561 = vld [vmem:[%s5 + $0x20] sm:$0xf]
  %v562 = vld [vmem:[%s5 + $0x24] sm:$0xf]
  %v563 = vld [vmem:[%s5 + $0x28] sm:$0xf]
  %v564 = vld [vmem:[%s5 + $0x2c] sm:$0xf]
  %v565 = vld [vmem:[%s5 + $0x30] sm:$0xf]
  %v566 = vld [vmem:[%s5 + $0x34] sm:$0xf]
  %v567 = vld [vmem:[%s5 + $0x38] sm:$0xf]
  %v568 = vld [vmem:[%s5 + $0x3c] sm:$0xf]
  %v569 = vld [vmem:[%s6] sm:$0x1]
  %v571 = vlaneseq
  %v572 = vshrl.u32 %v571, 7
  %v573 = vsub.s32 0, %v572
  %v574 = vrot.slane %v569, %v573
  %v592 = vunpack.c.l.b16 %v553
  %v593 = vunpack.c.l.b16 %v554
  %v594 = vunpack.c.l.b16 %v555
  %v595 = vunpack.c.l.b16 %v556
  %v596 = vunpack.c.l.b16 %v557
  %v597 = vunpack.c.l.b16 %v558
  %v598 = vunpack.c.l.b16 %v559
  %v599 = vunpack.c.l.b16 %v560
  %v600 = vunpack.c.l.b16 %v561
  %v601 = vunpack.c.l.b16 %v562
  %v602 = vunpack.c.l.b16 %v563
  %v603 = vunpack.c.l.b16 %v564
  %v604 = vunpack.c.l.b16 %v565
  %v605 = vunpack.c.l.b16 %v566
  %v606 = vunpack.c.l.b16 %v567
  %v607 = vunpack.c.l.b16 %v568
  %v608 = vpack.c.b16 %v593, %v592
  %v609 = vpack.c.b16 %v595, %v594
  %v610 = vpack.c.b16 %v597, %v596
  %v611 = vpack.c.b16 %v599, %v598
  %v612 = vpack.c.b16 %v601, %v600
  %v613 = vpack.c.b16 %v603, %v602
  %v614 = vpack.c.b16 %v605, %v604
  %v615 = vpack.c.b16 %v607, %v606
  %624 = vmatprep.subr.bf16.mxu0 0
  %625 = vmatpush1.bf16.msra.mxu0 %v615
  %626 = vmatprep.subr.bf16.mxu0 0
  %627 = vmatpush1.bf16.msra.mxu0 %v614
  %628 = vmatprep.subr.bf16.mxu0 0
  %629 = vmatpush1.bf16.msra.mxu0 %v613
  %630 = vmatprep.subr.bf16.mxu0 0
  %631 = vmatpush1.bf16.msra.mxu0 %v612
  %632 = vmatprep.subr.bf16.mxu0 0
  %633 = vmatpush1.bf16.msra.mxu0 %v611
  %634 = vmatprep.subr.bf16.mxu0 0
  %635 = vmatpush1.bf16.msra.mxu0 %v610
  %636 = vmatprep.subr.bf16.mxu0 0
  %637 = vmatpush1.bf16.msra.mxu0 %v609
  %638 = vmatprep.subr.bf16.mxu0 0
  %639 = vmatpush1.bf16.msra.mxu0 %v608
  %640 = vmatprep.subr.bf16.mxu0 0
  %641 = vmatpush2.bf16.msra.mxu0 0
  %642 = vmatprep.subr.bf16.mxu0 0
  %643 = vmatpush2.bf16.msra.mxu0 0
  %644 = vmatprep.subr.bf16.mxu0 0
  %645 = vmatpush2.bf16.msra.mxu0 0
  %646 = vmatprep.subr.bf16.mxu0 0
  %647 = vmatpush2.bf16.msra.mxu0 0
  %648 = vmatprep.subr.bf16.mxu0 0
  %649 = vmatpush2.bf16.msra.mxu0 0
  %650 = vmatprep.subr.bf16.mxu0 0
  %651 = vmatpush2.bf16.msra.mxu0 0
  %652 = vmatprep.subr.bf16.mxu0 0
  %653 = vmatpush2.bf16.msra.mxu0 0
  %654 = vmatprep.subr.bf16.mxu0 0
  %655 = vmatpush2.bf16.msra.mxu0 0
  %656 = vmatprep.mubr.bf16.mxu0 0
  %657 = vmatmul.mubr.bf16.gmra.mxu0 %v540
  %v658 = vpop.f32.mrf.mxu0
  %v659 = vadd.f32 %v574, %v658
  %v660 = vpop.f32.mrf.mxu0
  %v661 = vpop.f32.mrf.mxu0
  %v662 = vadd.f32 %v574, %v661
  %v663 = vpop.f32.mrf.mxu0
  %664 = vmatprep.mubr.bf16.mxu0 0
  %665 = vmatmul.mubr.bf16.gmra.mxu0 %v541
  %v666 = vpop.f32.mrf.mxu0
  %v667 = vadd.f32 %v574, %v666
  %v668 = vpop.f32.mrf.mxu0
  %v669 = vpop.f32.mrf.mxu0
  %v670 = vadd.f32 %v574, %v669
  %v671 = vpop.f32.mrf.mxu0
  %672 = vmatprep.mubr.bf16.mxu0 0
  %673 = vmatmul.mubr.bf16.gmra.mxu0 %v542
  %v674 = vpop.f32.mrf.mxu0
  %v675 = vadd.f32 %v574, %v674
  %v676 = vpop.f32.mrf.mxu0
  %v677 = vpop.f32.mrf.mxu0
  %v678 = vadd.f32 %v574, %v677
  %v679 = vpop.f32.mrf.mxu0
  %680 = vmatprep.mubr.bf16.mxu0 0
  %681 = vmatmul.mubr.bf16.gmra.mxu0 %v543
  %v682 = vpop.f32.mrf.mxu0
  %v683 = vadd.f32 %v574, %v682
  %v684 = vpop.f32.mrf.mxu0
  %v685 = vpop.f32.mrf.mxu0
  %v686 = vadd.f32 %v574, %v685
  %v687 = vpop.f32.mrf.mxu0
  %688 = vmatprep.mubr.bf16.mxu0 0
  %689 = vmatmul.mubr.bf16.gmra.mxu0 %v544
  %v690 = vpop.f32.mrf.mxu0
  %v691 = vadd.f32 %v574, %v690
  %v692 = vpop.f32.mrf.mxu0
  %v693 = vpop.f32.mrf.mxu0
  %v694 = vadd.f32 %v574, %v693
  %v695 = vpop.f32.mrf.mxu0
  %696 = vmatprep.mubr.bf16.mxu0 0
  %697 = vmatmul.mubr.bf16.gmra.mxu0 %v545
  %v698 = vpop.f32.mrf.mxu0
  %v699 = vadd.f32 %v574, %v698
  %v700 = vpop.f32.mrf.mxu0
  %v701 = vpop.f32.mrf.mxu0
  %v702 = vadd.f32 %v574, %v701
  %v703 = vpop.f32.mrf.mxu0
  %704 = vmatprep.mubr.bf16.mxu0 0
  %705 = vmatmul.mubr.bf16.gmra.mxu0 %v546
  %v706 = vpop.f32.mrf.mxu0
  %v707 = vadd.f32 %v574, %v706
  %v708 = vpop.f32.mrf.mxu0
  %v709 = vpop.f32.mrf.mxu0
  %v710 = vadd.f32 %v574, %v709
  %v711 = vpop.f32.mrf.mxu0
  %712 = vmatprep.mubr.bf16.mxu0 0
  %713 = vmatmul.mubr.bf16.gmra.mxu0 %v547
  %v714 = vpop.f32.mrf.mxu0
  %v715 = vadd.f32 %v574, %v714
  %v716 = vpop.f32.mrf.mxu0
  %v717 = vpop.f32.mrf.mxu0
  %v718 = vadd.f32 %v574, %v717
  %v719 = vpop.f32.mrf.mxu0
  %720 = vmatprep.mubr.bf16.mxu0 0
  %721 = vmatmul.mubr.bf16.gmra.mxu0 %v548
  %v722 = vpop.f32.mrf.mxu0
  %v723 = vadd.f32 %v574, %v722
  %v724 = vpop.f32.mrf.mxu0
  %v725 = vpop.f32.mrf.mxu0
  %v726 = vadd.f32 %v574, %v725
  %v727 = vpop.f32.mrf.mxu0
  %728 = vmatprep.mubr.bf16.mxu0 0
  %729 = vmatmul.mubr.bf16.gmra.mxu0 %v549
  %v730 = vpop.f32.mrf.mxu0
  %v731 = vadd.f32 %v574, %v730
  %v732 = vpop.f32.mrf.mxu0
  %v733 = vpop.f32.mrf.mxu0
  %v734 = vadd.f32 %v574, %v733
  %v735 = vpop.f32.mrf.mxu0
  %736 = vmatprep.mubr.bf16.mxu0 0
  %737 = vmatmul.mubr.bf16.gmra.mxu0 %v550
  %v738 = vpop.f32.mrf.mxu0
  %v739 = vadd.f32 %v574, %v738
  %v740 = vpop.f32.mrf.mxu0
  %v741 = vpop.f32.mrf.mxu0
  %v742 = vadd.f32 %v574, %v741
  %v743 = vpop.f32.mrf.mxu0
  %744 = vmatprep.mubr.bf16.mxu0 0
  %745 = vmatmul.mubr.bf16.gmra.mxu0 %v551
  %v746 = vpop.f32.mrf.mxu0
  %v747 = vadd.f32 %v574, %v746
  %v748 = vpop.f32.mrf.mxu0
  %v749 = vpop.f32.mrf.mxu0
  %v750 = vadd.f32 %v574, %v749
  %v751 = vpop.f32.mrf.mxu0
  %752 = vmatprep.mubr.bf16.mxu0 0
  %753 = vmatmul.mubr.bf16.gmra.mxu0 %v552
  %v754 = vpop.f32.mrf.mxu0
  %v755 = vadd.f32 %v574, %v754
  %v756 = vpop.f32.mrf.mxu0
  %v757 = vpop.f32.mrf.mxu0
  %v758 = vpop.f32.mrf.mxu0
  %759 = vdwg.mxu0
  %v760 = vmax.f32 %v659, 0.0
  %v761 = vmax.f32 %v662, 0.0
  %v762 = vmax.f32 %v667, 0.0
  %v763 = vmax.f32 %v670, 0.0
  %v764 = vmax.f32 %v675, 0.0
  %v765 = vmax.f32 %v678, 0.0
  %v766 = vmax.f32 %v683, 0.0
  %v767 = vmax.f32 %v686, 0.0
  %v768 = vmax.f32 %v691, 0.0
  %v769 = vmax.f32 %v694, 0.0
  %v770 = vmax.f32 %v699, 0.0
  %v771 = vmax.f32 %v702, 0.0
  %v772 = vmax.f32 %v707, 0.0
  %v773 = vmax.f32 %v710, 0.0
  %v774 = vmax.f32 %v715, 0.0
  %v775 = vmax.f32 %v718, 0.0
  %v776 = vmax.f32 %v723, 0.0
  %v777 = vmax.f32 %v726, 0.0
  %v778 = vmax.f32 %v731, 0.0
  %v779 = vmax.f32 %v734, 0.0
  %v780 = vmax.f32 %v739, 0.0
  %v781 = vmax.f32 %v742, 0.0
  %v782 = vmax.f32 %v747, 0.0
  %v783 = vmax.f32 %v750, 0.0
  %v784 = vmax.f32 %v755, 0.0
  %v785 = vpack.c.bf16 %v761, %v760
  %v786 = vpack.c.bf16 %v763, %v762
  %v787 = vpack.c.bf16 %v765, %v764
  %v788 = vpack.c.bf16 %v767, %v766
  %v789 = vpack.c.bf16 %v769, %v768
  %v790 = vpack.c.bf16 %v771, %v770
  %v791 = vpack.c.bf16 %v773, %v772
  %v792 = vpack.c.bf16 %v775, %v774
  %v793 = vpack.c.bf16 %v777, %v776
  %v794 = vpack.c.bf16 %v779, %v778
  %v795 = vpack.c.bf16 %v781, %v780
  %v796 = vpack.c.bf16 %v783, %v782
  %v797 = vpack.c.bf16 %v784, %v784
  %v798 = vld [vmem:[%s7] sm:$0xf]
  %v799 = vld [vmem:[%s7 + $0x4] sm:$0xf]
  %v800 = vld [vmem:[%s7 + $0x8] sm:$0xf]
  %v801 = vld [vmem:[%s7 + $0xc] sm:$0xf]
  %v802 = vld [vmem:[%s7 + $0x10] sm:$0xf]
  %v803 = vld [vmem:[%s7 + $0x14] sm:$0xf]
  %v804 = vld [vmem:[%s7 + $0x18] sm:$0xf]
  %v805 = vld [vmem:[%s7 + $0x1c] sm:$0xf]
  %v806 = vld [vmem:[%s7 + $0x20] sm:$0xf]
  %v807 = vld [vmem:[%s7 + $0x24] sm:$0xf]
  %v808 = vld [vmem:[%s7 + $0x28] sm:$0xf]
  %v809 = vld [vmem:[%s7 + $0x2c] sm:$0xf]
  %v810 = vld [vmem:[%s7 + $0x30] sm:$0xf]
  %v811 = vld [vmem:[%s7 + $0x34] sm:$0xf]
  %v812 = vld [vmem:[%s7 + $0x38] sm:$0xf]
  %v813 = vld [vmem:[%s7 + $0x3c] sm:$0xf]
  %v814 = vld [vmem:[%s8] sm:$0x1]
  %v816 = vlaneseq
  %v817 = vshrl.u32 %v816, 7
  %v818 = vsub.s32 0, %v817
  %v819 = vrot.slane %v814, %v818
  %v837 = vunpack.c.l.b16 %v798
  %v838 = vunpack.c.l.b16 %v799
  %v839 = vunpack.c.l.b16 %v800
  %v840 = vunpack.c.l.b16 %v801
  %v841 = vunpack.c.l.b16 %v802
  %v842 = vunpack.c.l.b16 %v803
  %v843 = vunpack.c.l.b16 %v804
  %v844 = vunpack.c.l.b16 %v805
  %v845 = vunpack.c.l.b16 %v806
  %v846 = vunpack.c.l.b16 %v807
  %v847 = vunpack.c.l.b16 %v808
  %v848 = vunpack.c.l.b16 %v809
  %v849 = vunpack.c.l.b16 %v810
  %v850 = vunpack.c.l.b16 %v811
  %v851 = vunpack.c.l.b16 %v812
  %v852 = vunpack.c.l.b16 %v813
  %v853 = vpack.c.b16 %v838, %v837
  %v854 = vpack.c.b16 %v840, %v839
  %v855 = vpack.c.b16 %v842, %v841
  %v856 = vpack.c.b16 %v844, %v843
  %v857 = vpack.c.b16 %v846, %v845
  %v858 = vpack.c.b16 %v848, %v847
  %v859 = vpack.c.b16 %v850, %v849
  %v860 = vpack.c.b16 %v852, %v851
  %869 = vmatprep.subr.bf16.mxu0 0
  %870 = vmatpush1.bf16.msra.mxu0 %v860
  %871 = vmatprep.subr.bf16.mxu0 0
  %872 = vmatpush1.bf16.msra.mxu0 %v859
  %873 = vmatprep.subr.bf16.mxu0 0
  %874 = vmatpush1.bf16.msra.mxu0 %v858
  %875 = vmatprep.subr.bf16.mxu0 0
  %876 = vmatpush1.bf16.msra.mxu0 %v857
  %877 = vmatprep.subr.bf16.mxu0 0
  %878 = vmatpush1.bf16.msra.mxu0 %v856
  %879 = vmatprep.subr.bf16.mxu0 0
  %880 = vmatpush1.bf16.msra.mxu0 %v855
  %881 = vmatprep.subr.bf16.mxu0 0
  %882 = vmatpush1.bf16.msra.mxu0 %v854
  %883 = vmatprep.subr.bf16.mxu0 0
  %884 = vmatpush1.bf16.msra.mxu0 %v853
  %885 = vmatprep.subr.bf16.mxu0 0
  %886 = vmatpush2.bf16.msra.mxu0 0
  %887 = vmatprep.subr.bf16.mxu0 0
  %888 = vmatpush2.bf16.msra.mxu0 0
  %889 = vmatprep.subr.bf16.mxu0 0
  %890 = vmatpush2.bf16.msra.mxu0 0
  %891 = vmatprep.subr.bf16.mxu0 0
  %892 = vmatpush2.bf16.msra.mxu0 0
  %893 = vmatprep.subr.bf16.mxu0 0
  %894 = vmatpush2.bf16.msra.mxu0 0
  %895 = vmatprep.subr.bf16.mxu0 0
  %896 = vmatpush2.bf16.msra.mxu0 0
  %897 = vmatprep.subr.bf16.mxu0 0
  %898 = vmatpush2.bf16.msra.mxu0 0
  %899 = vmatprep.subr.bf16.mxu0 0
  %900 = vmatpush2.bf16.msra.mxu0 0
  %901 = vmatprep.mubr.bf16.mxu0 0
  %902 = vmatmul.mubr.bf16.gmra.mxu0 %v785
  %v903 = vpop.f32.mrf.mxu0
  %v904 = vadd.f32 %v819, %v903
  %v905 = vpop.f32.mrf.mxu0
  %v906 = vpop.f32.mrf.mxu0
  %v907 = vadd.f32 %v819, %v906
  %v908 = vpop.f32.mrf.mxu0
  %909 = vmatprep.mubr.bf16.mxu0 0
  %910 = vmatmul.mubr.bf16.gmra.mxu0 %v786
  %v911 = vpop.f32.mrf.mxu0
  %v912 = vadd.f32 %v819, %v911
  %v913 = vpop.f32.mrf.mxu0
  %v914 = vpop.f32.mrf.mxu0
  %v915 = vadd.f32 %v819, %v914
  %v916 = vpop.f32.mrf.mxu0
  %917 = vmatprep.mubr.bf16.mxu0 0
  %918 = vmatmul.mubr.bf16.gmra.mxu0 %v787
  %v919 = vpop.f32.mrf.mxu0
  %v920 = vadd.f32 %v819, %v919
  %v921 = vpop.f32.mrf.mxu0
  %v922 = vpop.f32.mrf.mxu0
  %v923 = vadd.f32 %v819, %v922
  %v924 = vpop.f32.mrf.mxu0
  %925 = vmatprep.mubr.bf16.mxu0 0
  %926 = vmatmul.mubr.bf16.gmra.mxu0 %v788
  %v927 = vpop.f32.mrf.mxu0
  %v928 = vadd.f32 %v819, %v927
  %v929 = vpop.f32.mrf.mxu0
  %v930 = vpop.f32.mrf.mxu0
  %v931 = vadd.f32 %v819, %v930
  %v932 = vpop.f32.mrf.mxu0
  %933 = vmatprep.mubr.bf16.mxu0 0
  %934 = vmatmul.mubr.bf16.gmra.mxu0 %v789
  %v935 = vpop.f32.mrf.mxu0
  %v936 = vadd.f32 %v819, %v935
  %v937 = vpop.f32.mrf.mxu0
  %v938 = vpop.f32.mrf.mxu0
  %v939 = vadd.f32 %v819, %v938
  %v940 = vpop.f32.mrf.mxu0
  %941 = vmatprep.mubr.bf16.mxu0 0
  %942 = vmatmul.mubr.bf16.gmra.mxu0 %v790
  %v943 = vpop.f32.mrf.mxu0
  %v944 = vadd.f32 %v819, %v943
  %v945 = vpop.f32.mrf.mxu0
  %v946 = vpop.f32.mrf.mxu0
  %v947 = vadd.f32 %v819, %v946
  %v948 = vpop.f32.mrf.mxu0
  %949 = vmatprep.mubr.bf16.mxu0 0
  %950 = vmatmul.mubr.bf16.gmra.mxu0 %v791
  %v951 = vpop.f32.mrf.mxu0
  %v952 = vadd.f32 %v819, %v951
  %v953 = vpop.f32.mrf.mxu0
  %v954 = vpop.f32.mrf.mxu0
  %v955 = vadd.f32 %v819, %v954
  %v956 = vpop.f32.mrf.mxu0
  %957 = vmatprep.mubr.bf16.mxu0 0
  %958 = vmatmul.mubr.bf16.gmra.mxu0 %v792
  %v959 = vpop.f32.mrf.mxu0
  %v960 = vadd.f32 %v819, %v959
  %v961 = vpop.f32.mrf.mxu0
  %v962 = vpop.f32.mrf.mxu0
  %v963 = vadd.f32 %v819, %v962
  %v964 = vpop.f32.mrf.mxu0
  %965 = vmatprep.mubr.bf16.mxu0 0
  %966 = vmatmul.mubr.bf16.gmra.mxu0 %v793
  %v967 = vpop.f32.mrf.mxu0
  %v968 = vadd.f32 %v819, %v967
  %v969 = vpop.f32.mrf.mxu0
  %v970 = vpop.f32.mrf.mxu0
  %v971 = vadd.f32 %v819, %v970
  %v972 = vpop.f32.mrf.mxu0
  %973 = vmatprep.mubr.bf16.mxu0 0
  %974 = vmatmul.mubr.bf16.gmra.mxu0 %v794
  %v975 = vpop.f32.mrf.mxu0
  %v976 = vadd.f32 %v819, %v975
  %v977 = vpop.f32.mrf.mxu0
  %v978 = vpop.f32.mrf.mxu0
  %v979 = vadd.f32 %v819, %v978
  %v980 = vpop.f32.mrf.mxu0
  %981 = vmatprep.mubr.bf16.mxu0 0
  %982 = vmatmul.mubr.bf16.gmra.mxu0 %v795
  %v983 = vpop.f32.mrf.mxu0
  %v984 = vadd.f32 %v819, %v983
  %v985 = vpop.f32.mrf.mxu0
  %v986 = vpop.f32.mrf.mxu0
  %v987 = vadd.f32 %v819, %v986
  %v988 = vpop.f32.mrf.mxu0
  %989 = vmatprep.mubr.bf16.mxu0 0
  %990 = vmatmul.mubr.bf16.gmra.mxu0 %v796
  %v991 = vpop.f32.mrf.mxu0
  %v992 = vadd.f32 %v819, %v991
  %v993 = vpop.f32.mrf.mxu0
  %v994 = vpop.f32.mrf.mxu0
  %v995 = vadd.f32 %v819, %v994
  %v996 = vpop.f32.mrf.mxu0
  %997 = vmatprep.mubr.bf16.mxu0 0
  %998 = vmatmul.mubr.bf16.gmra.mxu0 %v797
  %v999 = vpop.f32.mrf.mxu0
  %v1000 = vadd.f32 %v819, %v999
  %v1001 = vpop.f32.mrf.mxu0
  %v1002 = vpop.f32.mrf.mxu0
  %v1003 = vpop.f32.mrf.mxu0
  %1004 = vdwg.mxu0
  %vm1005 = vcmask 130048
  %1006 = vst.msk [vmem:[%s9] sm:$0xff] %vm1005, %v904
  %1007 = vst.msk [vmem:[%s9 + $0x8] sm:$0xff] %vm1005, %v907
  %1008 = vst.msk [vmem:[%s9 + $0x10] sm:$0xff] %vm1005, %v912
  %1009 = vst.msk [vmem:[%s9 + $0x18] sm:$0xff] %vm1005, %v915
  %1010 = vst.msk [vmem:[%s9 + $0x20] sm:$0xff] %vm1005, %v920
  %1011 = vst.msk [vmem:[%s9 + $0x28] sm:$0xff] %vm1005, %v923
  %1012 = vst.msk [vmem:[%s9 + $0x30] sm:$0xff] %vm1005, %v928
  %1013 = vst.msk [vmem:[%s9 + $0x38] sm:$0xff] %vm1005, %v931
  %1014 = vst.msk [vmem:[%s9 + $0x40] sm:$0xff] %vm1005, %v936
  %1015 = vst.msk [vmem:[%s9 + $0x48] sm:$0xff] %vm1005, %v939
  %1016 = vst.msk [vmem:[%s9 + $0x50] sm:$0xff] %vm1005, %v944
  %1017 = vst.msk [vmem:[%s9 + $0x58] sm:$0xff] %vm1005, %v947
  %1018 = vst.msk [vmem:[%s9 + $0x60] sm:$0xff] %vm1005, %v952
  %1019 = vst.msk [vmem:[%s9 + $0x68] sm:$0xff] %vm1005, %v955
  %1020 = vst.msk [vmem:[%s9 + $0x70] sm:$0xff] %vm1005, %v960
  %1021 = vst.msk [vmem:[%s9 + $0x78] sm:$0xff] %vm1005, %v963
  %1022 = vst.msk [vmem:[%s9 + $0x80] sm:$0xff] %vm1005, %v968
  %1023 = vst.msk [vmem:[%s9 + $0x88] sm:$0xff] %vm1005, %v971
  %1024 = vst.msk [vmem:[%s9 + $0x90] sm:$0xff] %vm1005, %v976
  %1025 = vst.msk [vmem:[%s9 + $0x98] sm:$0xff] %vm1005, %v979
  %1026 = vst.msk [vmem:[%s9 + $0xa0] sm:$0xff] %vm1005, %v984
  %1027 = vst.msk [vmem:[%s9 + $0xa8] sm:$0xff] %vm1005, %v987
  %1028 = vst.msk [vmem:[%s9 + $0xb0] sm:$0xff] %vm1005, %v992
  %1029 = vst.msk [vmem:[%s9 + $0xb8] sm:$0xff] %vm1005, %v995
  %1030 = vst.msk [vmem:[%s9 + $0xc0] sm:$0xff] %vm1005, %v1000
  // Predicated region
  $region38: #{tpu_custom_call.1} parent=0 // pred_check
    _
  $region39: #{tpu_custom_call.1} parent=0 // pred_check_branch
    %1032 = sbr.rel (0) target = $region41
  $region40: #{tpu_custom_call.1} parent=0 // pred_region
    _
  $region41: #{tpu_custom_call.1} parent=0 // pred_fallthru
    _
  // Predicated region
  $region42: #{tpu_custom_call.1} parent=0 // pred_check
    _
  $region43: #{tpu_custom_call.1} parent=0 // pred_check_branch
    %1034 = sbr.rel (0) target = $region45
  $region44: #{tpu_custom_call.1} parent=0 // pred_region
    _
  $region45: #{tpu_custom_call.1} parent=0 // pred_fallthru
    _

</llo_original>
